<compile_context>
chip_gen: v5e
topology: v5e:2x2
jax: 0.10.0
libtpu: 0.0.40
codegen_flags: <defaults>
</compile_context>

<pallas_src>
import jax
import jax.numpy as jnp
from jax import lax
from jax.experimental import pallas as pl
from jax.experimental.pallas import tpu as pltpu


def _round_up(x, m):
    return (x + m - 1) // m * m


def _sublane_align(dtype):
    return {4: 8, 2: 16, 1: 32}.get(jnp.dtype(dtype).itemsize, 8)


def masked_smooth_l1_partials(depth, depth_g, depth_min,
                              *, target_block_bytes=6 * 1024 * 1024):
    """depth, depth_g: (B, H, W); depth_min: (B,) near planes.

    Returns (sum, cnt), each (B, n_c, 8, 128) f32, such that
        sum.sum() / cnt.sum()
    equals F.smooth_l1_loss(depth[mask], depth_g[mask], reduction='mean') with
    mask = depth_g > depth_min[:, None, None] (compares done in f32).
    """
    assert depth.shape == depth_g.shape
    B, H, W = depth.shape

    item_d = jnp.dtype(depth.dtype).itemsize
    item_g = jnp.dtype(depth_g.dtype).itemsize
    row_align = max(_sublane_align(depth.dtype), _sublane_align(depth_g.dtype))

    # Lane dim padded (via the BlockSpec, not the array) to a multiple of 128.
    wp = _round_up(W, 128)
    # Row tile so the larger input tile is ~target_block_bytes.
    th = target_block_bytes // (wp * max(item_d, item_g))
    th = max(row_align, th // row_align * row_align)
    th = min(th, _round_up(H, row_align))

    n_h = pl.cdiv(H, th)
    # 2-way core-parallel split of each batch's row tiles so both v7x
    # TensorCores get work even at B == 1 / odd B.  Harmless on 1-TC chips.
    n_c = 2 if n_h >= 2 else 1
    n_half = pl.cdiv(n_h, n_c)

    needs_col_mask = (W % 128) != 0           # ragged lanes in the block
    needs_row_mask = (H % th) != 0            # ragged rows in the last block
    has_waste = (n_c * n_half) != n_h         # one clamped duplicate tile

    def kernel(dmin_ref, d_ref, g_ref, sum_ref, cnt_ref):
        b = pl.program_id(0)
        c = pl.program_id(1)
        h = pl.program_id(2)

        # New (batch, chunk) -> (re)initialize the resident accumulators.
        @pl.when(h == 0)
        def _():
            sum_ref[...] = jnp.zeros_like(sum_ref)
            cnt_ref[...] = jnp.zeros_like(cnt_ref)

        dmin = dmin_ref[b]                          # scalar read from SMEM

        d = d_ref[0].astype(jnp.float32)            # (th, wp)
        g = g_ref[0].astype(jnp.float32)            # (th, wp)

        m = g > dmin
        if needs_row_mask or needs_col_mask or has_waste:
            t = c * n_half + h                      # global row-tile index
            if needs_row_mask or has_waste:
                rows_left = H - jnp.minimum(t, n_h - 1) * th
                row_ids = lax.broadcasted_iota(jnp.int32, (th, wp), 0)
                m = jnp.logical_and(m, row_ids < rows_left)
            if needs_col_mask:
                col_ids = lax.broadcasted_iota(jnp.int32, (th, wp), 1)
                m = jnp.logical_and(m, col_ids < W)
            if has_waste:
                m = jnp.logical_and(m, t < n_h)     # clamped duplicate tile

        # Branchless smooth-L1 (beta = 1): q = min(|d-g|, 1); q*(|d-g| - q/2).
        # The single select also zeroes any garbage read from the ragged tail
        # of a partial block, so NaN/Inf never reaches the accumulators.
        diff = jnp.where(m, d - g, 0.0)
        adiff = jnp.abs(diff)
        q = jnp.minimum(adiff, 1.0)
        per = q * (adiff - 0.5 * q)
        mf = m.astype(jnp.float32)

        # Fold the tile into vreg-shaped (8, 128) partials: the reshape splits
        # along (8, 128) tile boundaries and the reduction is over non-minor
        # axes -> pure VPU adds, no cross-lane XLU work in the streaming loop.
        sum_ref[0, 0] += per.reshape(th // 8, 8, wp // 128, 128).sum(axis=(0, 2))
        cnt_ref[0, 0] += mf.reshape(th // 8, 8, wp // 128, 128).sum(axis=(0, 2))

    def in_map(b, c, h, dmin):
        t = c * n_half + h
        if has_waste:
            t = jnp.minimum(t, n_h - 1)             # never index past the end
        return (b, t, 0)

    def out_map(b, c, h, dmin):
        return (b, c, 0, 0)

    # 2 inputs x 2 pipeline buffers + small resident outputs, with headroom.
    in_bytes_per_step = th * wp * (item_d + item_g)
    vmem_limit = min(max(2 * in_bytes_per_step * 5 // 4 + (2 << 20),
                         16 << 20), 60 << 20)

    sum_out, cnt_out = pl.pallas_call(
        kernel,
        out_shape=(jax.ShapeDtypeStruct((B, n_c, 8, 128), jnp.float32),
                   jax.ShapeDtypeStruct((B, n_c, 8, 128), jnp.float32)),
        grid_spec=pltpu.PrefetchScalarGridSpec(
            num_scalar_prefetch=1,                  # depth_min -> SMEM
            grid=(B, n_c, n_half),
            in_specs=[
                pl.BlockSpec((1, th, wp), in_map),
                pl.BlockSpec((1, th, wp), in_map),
            ],
            out_specs=(
                pl.BlockSpec((1, 1, 8, 128), out_map),
                pl.BlockSpec((1, 1, 8, 128), out_map),
            ),
        ),
        compiler_params=pltpu.CompilerParams(
            dimension_semantics=("parallel", "parallel", "arbitrary"),
            vmem_limit_bytes=vmem_limit),
    )(depth_min.astype(jnp.float32), depth, depth_g)
    return sum_out, cnt_out


def loss_forward(outputs, depth_gt, depth_range, *, jnp_fallback_pixels=0):
    """Mirrors Loss.forward: sum over scales of masked-mean smooth-L1.

    Scales with fewer than `jnp_fallback_pixels` total pixels are computed
    with plain XLA (launch overhead dominates tiny pyramid levels); set to
    e.g. 1 << 19 in production.  Default 0 keeps everything on the kernel.
    """
    depth_min = depth_range[:, 0].astype(jnp.float32)            # (B,)
    total = jnp.float32(0.0)
    # TODO(synk): scales sharing a lane width could be fused into one
    # pallas_call (concat along H + per-scale accumulator slots) to drop the
    # remaining per-scale launch overhead.
    for depth, depth_g in zip(outputs["depth"], depth_gt.values()):
        B, H, W = depth.shape
        if B * H * W < jnp_fallback_pixels:
            dmin = depth_min.reshape(-1, 1, 1)
            d = depth.astype(jnp.float32)
            g = depth_g.astype(jnp.float32)
            m = g > dmin
            diff = jnp.where(m, d - g, 0.0)
            a = jnp.abs(diff)
            q = jnp.minimum(a, 1.0)
            total = total + jnp.sum(q * (a - 0.5 * q)) / jnp.sum(m)
        else:
            s, c = masked_smooth_l1_partials(depth, depth_g, depth_min)
            # NaN when no pixel is valid -> matches F.smooth_l1_loss on an
            # empty selection.
            total = total + jnp.sum(s) / jnp.sum(c)
    return total


def _reference_loss(outputs, depth_gt, depth_range):
    total = jnp.float32(0.0)
    for d, g in zip(outputs["depth"], depth_gt.values()):
        dmin = depth_range[:, 0].astype(jnp.float32).reshape(-1, 1, 1)
        d = d.astype(jnp.float32)
        g = g.astype(jnp.float32)
        mask = g > dmin
        diff = d - g
        adiff = jnp.abs(diff)
        per = jnp.where(adiff < 1.0, 0.5 * diff * diff, adiff - 0.5)
        total = total + jnp.sum(jnp.where(mask, per, 0.0)) / jnp.sum(mask)
    return total


if __name__ == "__main__":
    key = jax.random.PRNGKey(0)
    k1, k2, k3, k4, k5, k6 = jax.random.split(key, 6)

    B = 2
    # Two depth scales (coarse-to-fine), as produced by a multi-stage MVS net.
    shape0 = (B, 16, 128)
    shape1 = (B, 8, 128)

    depths = [
        jax.random.uniform(k1, shape0, jnp.float32, 0.0, 2.0),
        jax.random.uniform(k2, shape1, jnp.float32, 0.0, 2.0),
    ]
    depth_gt = {
        "stage_0": jax.random.uniform(k3, shape0, jnp.float32, 0.0, 2.0),
        "stage_1": jax.random.uniform(k4, shape1, jnp.float32, 0.0, 2.0),
    }
    depth_range = jnp.stack(
        [jnp.full((B,), 0.5, jnp.float32),     # near plane
         jnp.full((B,), 2.0, jnp.float32)],    # far plane
        axis=1)                                # (B, 2)

    outputs = {"depth": depths}

    loss = jax.jit(loss_forward)(outputs, depth_gt, depth_range)
    loss = jax.block_until_ready(loss)

    ref = _reference_loss(outputs, depth_gt, depth_range)
    assert jnp.allclose(loss, ref, rtol=1e-3, atol=1e-5), (loss, ref)

    # Also exercise the ragged-tail + 2-way core-parallel path (H % tile != 0,
    # odd tile count -> clamped duplicate tile) with a deliberately tiny tile.
    d_r = jax.random.uniform(k5, (B, 40, 128), jnp.float32, 0.0, 2.0)
    g_r = jax.random.uniform(k6, (B, 40, 128), jnp.float32, 0.0, 2.0)
    dmin = depth_range[:, 0]
    s, c = masked_smooth_l1_partials(d_r, g_r, dmin, target_block_bytes=8192)
    got = jnp.sum(s) / jnp.sum(c)
    mr = g_r > dmin.reshape(-1, 1, 1)
    diff = jnp.where(mr, d_r - g_r, 0.0)
    a = jnp.abs(diff)
    q = jnp.minimum(a, 1.0)
    ref_r = jnp.sum(q * (a - 0.5 * q)) / jnp.sum(mr)
    got, ref_r = jax.block_until_ready((got, ref_r))
    assert jnp.allclose(got, ref_r, rtol=1e-3, atol=1e-5), (got, ref_r)

    print("KERNEL_OK")
</pallas_src>

<mosaic_0001>
module attributes {stable_mosaic.version = 11 : i64} {
  func.func @kernel(%arg0: i32, %arg1: i32, %arg2: i32, %arg3: memref<2xf32, #tpu.memory_space<smem>>, %arg4: memref<1x16x128xf32, #tpu.memory_space<vmem>>, %arg5: memref<1x16x128xf32, #tpu.memory_space<vmem>>, %arg6: memref<1x1x8x128xf32, #tpu.memory_space<vmem>>, %arg7: memref<1x1x8x128xf32, #tpu.memory_space<vmem>>) attributes {dimension_semantics = [#tpu.dimension_semantics<parallel>, #tpu.dimension_semantics<parallel>, #tpu.dimension_semantics<arbitrary>], iteration_bounds = array<i64: 2, 1, 1>, scalar_prefetch = 1 : i64, scratch_operands = 0 : i64, tpu.core_type = #tpu.core_type<tc>, window_params = [{transform_indices = @transform_0, window_bounds = array<i64: 1, 16, 128>}, {transform_indices = @transform_1, window_bounds = array<i64: 1, 16, 128>}, {transform_indices = @transform_2, window_bounds = array<i64: 1, 1, 8, 128>}, {transform_indices = @transform_3, window_bounds = array<i64: 1, 1, 8, 128>}]} {
    %c0_i32 = arith.constant 0 : i32
    %0 = arith.cmpi eq, %arg2, %c0_i32 : i32
    %1 = arith.extui %0 : i1 to i32
    %c0_i32_0 = arith.constant 0 : i32
    %2 = arith.cmpi ne, %1, %c0_i32_0 : i32
    scf.if %2 {
      %cst_26 = arith.constant 0.000000e+00 : f32
      %39 = vector.broadcast %cst_26 : f32 to vector<1x1x8x128xf32>
      %c0_27 = arith.constant 0 : index
      %c0_28 = arith.constant 0 : index
      %c0_29 = arith.constant 0 : index
      %c0_30 = arith.constant 0 : index
      %40 = vector.load %arg6[%c0_27, %c0_28, %c0_29, %c0_30] : memref<1x1x8x128xf32, #tpu.memory_space<vmem>>, vector<1x1x8x128xf32>
      tpu.vector_store %arg6[%c0_27, %c0_28, %c0_29, %c0_30], %39 {strides = array<i32>} : memref<1x1x8x128xf32, #tpu.memory_space<vmem>>, vector<1x1x8x128xf32>,
      %cst_31 = arith.constant 0.000000e+00 : f32
      %41 = vector.broadcast %cst_31 : f32 to vector<1x1x8x128xf32>
      %c0_32 = arith.constant 0 : index
      %c0_33 = arith.constant 0 : index
      %c0_34 = arith.constant 0 : index
      %c0_35 = arith.constant 0 : index
      %42 = vector.load %arg7[%c0_32, %c0_33, %c0_34, %c0_35] : memref<1x1x8x128xf32, #tpu.memory_space<vmem>>, vector<1x1x8x128xf32>
      tpu.vector_store %arg7[%c0_32, %c0_33, %c0_34, %c0_35], %41 {strides = array<i32>} : memref<1x1x8x128xf32, #tpu.memory_space<vmem>>, vector<1x1x8x128xf32>,
    } else {
    }
    %3 = arith.index_cast %arg0 : i32 to index
    %4 = memref.load %arg3[%3] : memref<2xf32, #tpu.memory_space<smem>>
    %c0 = arith.constant 0 : index
    %c0_1 = arith.constant 0 : index
    %c0_2 = arith.constant 0 : index
    %5 = vector.load %arg4[%c0, %c0_1, %c0_2] : memref<1x16x128xf32, #tpu.memory_space<vmem>>, vector<1x16x128xf32>
    %6 = vector.shape_cast %5 : vector<1x16x128xf32> to vector<16x128xf32>
    %c0_3 = arith.constant 0 : index
    %c0_4 = arith.constant 0 : index
    %c0_5 = arith.constant 0 : index
    %7 = vector.load %arg5[%c0_3, %c0_4, %c0_5] : memref<1x16x128xf32, #tpu.memory_space<vmem>>, vector<1x16x128xf32>
    %8 = vector.shape_cast %7 : vector<1x16x128xf32> to vector<16x128xf32>
    %9 = vector.broadcast %4 : f32 to vector<16x128xf32>
    %10 = arith.cmpf ogt, %8, %9 : vector<16x128xf32>
    %11 = arith.subf %6, %8 : vector<16x128xf32>
    %cst = arith.constant 0.000000e+00 : f32
    %12 = vector.broadcast %cst : f32 to vector<16x128xf32>
    %13 = arith.select %10, %11, %12 : vector<16x128xi1>, vector<16x128xf32>
    %14 = math.absf %13 : vector<16x128xf32>
    %cst_6 = arith.constant 1.000000e+00 : f32
    %15 = vector.broadcast %cst_6 : f32 to vector<16x128xf32>
    %16 = arith.minimumf %14, %15 : vector<16x128xf32>
    %cst_7 = arith.constant 5.000000e-01 : f32
    %17 = vector.broadcast %cst_7 : f32 to vector<16x128xf32>
    %18 = arith.mulf %17, %16 : vector<16x128xf32>
    %19 = arith.subf %14, %18 : vector<16x128xf32>
    %20 = arith.mulf %16, %19 : vector<16x128xf32>
    %21 = arith.extui %10 : vector<16x128xi1> to vector<16x128xi32>
    %22 = arith.sitofp %21 : vector<16x128xi32> to vector<16x128xf32>
    %c0_8 = arith.constant 0 : index
    %c0_9 = arith.constant 0 : index
    %c0_10 = arith.constant 0 : index
    %c0_11 = arith.constant 0 : index
    %23 = vector.load %arg6[%c0_8, %c0_9, %c0_10, %c0_11] : memref<1x1x8x128xf32, #tpu.memory_space<vmem>>, vector<1x1x8x128xf32>
    %24 = vector.shape_cast %23 : vector<1x1x8x128xf32> to vector<8x128xf32>
    %25 = vector.shape_cast %20 : vector<16x128xf32> to vector<2x8x1x128xf32>
    %cst_12 = arith.constant dense<0.000000e+00> : vector<8x128xf32>
    %26 = vector.multi_reduction <add>, %25, %cst_12 [0, 2] : vector<2x8x1x128xf32> to vector<8x128xf32>
    %27 = arith.addf %24, %26 : vector<8x128xf32>
    %c0_13 = arith.constant 0 : index
    %c0_14 = arith.constant 0 : index
    %c0_15 = arith.constant 0 : index
    %c0_16 = arith.constant 0 : index
    %28 = vector.load %arg6[%c0_13, %c0_14, %c0_15, %c0_16] : memref<1x1x8x128xf32, #tpu.memory_space<vmem>>, vector<1x1x8x128xf32>
    %29 = vector.shape_cast %28 : vector<1x1x8x128xf32> to vector<8x128xf32>
    %30 = vector.shape_cast %27 : vector<8x128xf32> to vector<1x1x8x128xf32>
    tpu.vector_store %arg6[%c0_13, %c0_14, %c0_15, %c0_16], %30 {strides = array<i32>} : memref<1x1x8x128xf32, #tpu.memory_space<vmem>>, vector<1x1x8x128xf32>,
    %c0_17 = arith.constant 0 : index
    %c0_18 = arith.constant 0 : index
    %c0_19 = arith.constant 0 : index
    %c0_20 = arith.constant 0 : index
    %31 = vector.load %arg7[%c0_17, %c0_18, %c0_19, %c0_20] : memref<1x1x8x128xf32, #tpu.memory_space<vmem>>, vector<1x1x8x128xf32>
    %32 = vector.shape_cast %31 : vector<1x1x8x128xf32> to vector<8x128xf32>
    %33 = vector.shape_cast %22 : vector<16x128xf32> to vector<2x8x1x128xf32>
    %cst_21 = arith.constant dense<0.000000e+00> : vector<8x128xf32>
    %34 = vector.multi_reduction <add>, %33, %cst_21 [0, 2] : vector<2x8x1x128xf32> to vector<8x128xf32>
    %35 = arith.addf %32, %34 : vector<8x128xf32>
    %c0_22 = arith.constant 0 : index
    %c0_23 = arith.constant 0 : index
    %c0_24 = arith.constant 0 : index
    %c0_25 = arith.constant 0 : index
    %36 = vector.load %arg7[%c0_22, %c0_23, %c0_24, %c0_25] : memref<1x1x8x128xf32, #tpu.memory_space<vmem>>, vector<1x1x8x128xf32>
    %37 = vector.shape_cast %36 : vector<1x1x8x128xf32> to vector<8x128xf32>
    %38 = vector.shape_cast %35 : vector<8x128xf32> to vector<1x1x8x128xf32>
    tpu.vector_store %arg7[%c0_22, %c0_23, %c0_24, %c0_25], %38 {strides = array<i32>} : memref<1x1x8x128xf32, #tpu.memory_space<vmem>>, vector<1x1x8x128xf32>,
    return
  }
  func.func @transform_0(%arg0: i32, %arg1: i32, %arg2: i32, %arg3: memref<2xf32, #tpu.memory_space<smem>>) -> (i32, i32, i32) {
    %c1_i32 = arith.constant 1 : i32
    %0 = arith.muli %arg1, %c1_i32 : i32
    %1 = arith.addi %0, %arg2 : i32
    %c0_i32 = arith.constant 0 : i32
    %c0_i32_0 = arith.constant 0 : i32
    return %arg0, %1, %c0_i32 : i32, i32, i32
  }
  func.func @transform_1(%arg0: i32, %arg1: i32, %arg2: i32, %arg3: memref<2xf32, #tpu.memory_space<smem>>) -> (i32, i32, i32) {
    %c1_i32 = arith.constant 1 : i32
    %0 = arith.muli %arg1, %c1_i32 : i32
    %1 = arith.addi %0, %arg2 : i32
    %c0_i32 = arith.constant 0 : i32
    %c0_i32_0 = arith.constant 0 : i32
    return %arg0, %1, %c0_i32 : i32, i32, i32
  }
  func.func @transform_2(%arg0: i32, %arg1: i32, %arg2: i32, %arg3: memref<2xf32, #tpu.memory_space<smem>>) -> (i32, i32, i32, i32) {
    %c0_i32 = arith.constant 0 : i32
    %c0_i32_0 = arith.constant 0 : i32
    %c0_i32_1 = arith.constant 0 : i32
    return %arg0, %arg1, %c0_i32, %c0_i32_0 : i32, i32, i32, i32
  }
  func.func @transform_3(%arg0: i32, %arg1: i32, %arg2: i32, %arg3: memref<2xf32, #tpu.memory_space<smem>>) -> (i32, i32, i32, i32) {
    %c0_i32 = arith.constant 0 : i32
    %c0_i32_0 = arith.constant 0 : i32
    %c0_i32_1 = arith.constant 0 : i32
    return %arg0, %arg1, %c0_i32, %c0_i32_0 : i32, i32, i32, i32
  }
}

module attributes {stable_mosaic.version = 11 : i64} {
  func.func @kernel(%arg0: i32, %arg1: i32, %arg2: i32, %arg3: memref<2xf32, #tpu.memory_space<smem>>, %arg4: memref<1x8x128xf32, #tpu.memory_space<vmem>>, %arg5: memref<1x8x128xf32, #tpu.memory_space<vmem>>, %arg6: memref<1x1x8x128xf32, #tpu.memory_space<vmem>>, %arg7: memref<1x1x8x128xf32, #tpu.memory_space<vmem>>) attributes {dimension_semantics = [#tpu.dimension_semantics<parallel>, #tpu.dimension_semantics<parallel>, #tpu.dimension_semantics<arbitrary>], iteration_bounds = array<i64: 2, 1, 1>, scalar_prefetch = 1 : i64, scratch_operands = 0 : i64, tpu.core_type = #tpu.core_type<tc>, window_params = [{transform_indices = @transform_0, window_bounds = array<i64: 1, 8, 128>}, {transform_indices = @transform_1, window_bounds = array<i64: 1, 8, 128>}, {transform_indices = @transform_2, window_bounds = array<i64: 1, 1, 8, 128>}, {transform_indices = @transform_3, window_bounds = array<i64: 1, 1, 8, 128>}]} {
    %c0_i32 = arith.constant 0 : i32
    %0 = arith.cmpi eq, %arg2, %c0_i32 : i32
    %1 = arith.extui %0 : i1 to i32
    %c0_i32_0 = arith.constant 0 : i32
    %2 = arith.cmpi ne, %1, %c0_i32_0 : i32
    scf.if %2 {
      %cst_26 = arith.constant 0.000000e+00 : f32
      %39 = vector.broadcast %cst_26 : f32 to vector<1x1x8x128xf32>
      %c0_27 = arith.constant 0 : index
      %c0_28 = arith.constant 0 : index
      %c0_29 = arith.constant 0 : index
      %c0_30 = arith.constant 0 : index
      %40 = vector.load %arg6[%c0_27, %c0_28, %c0_29, %c0_30] : memref<1x1x8x128xf32, #tpu.memory_space<vmem>>, vector<1x1x8x128xf32>
      tpu.vector_store %arg6[%c0_27, %c0_28, %c0_29, %c0_30], %39 {strides = array<i32>} : memref<1x1x8x128xf32, #tpu.memory_space<vmem>>, vector<1x1x8x128xf32>,
      %cst_31 = arith.constant 0.000000e+00 : f32
      %41 = vector.broadcast %cst_31 : f32 to vector<1x1x8x128xf32>
      %c0_32 = arith.constant 0 : index
      %c0_33 = arith.constant 0 : index
      %c0_34 = arith.constant 0 : index
      %c0_35 = arith.constant 0 : index
      %42 = vector.load %arg7[%c0_32, %c0_33, %c0_34, %c0_35] : memref<1x1x8x128xf32, #tpu.memory_space<vmem>>, vector<1x1x8x128xf32>
      tpu.vector_store %arg7[%c0_32, %c0_33, %c0_34, %c0_35], %41 {strides = array<i32>} : memref<1x1x8x128xf32, #tpu.memory_space<vmem>>, vector<1x1x8x128xf32>,
    } else {
    }
    %3 = arith.index_cast %arg0 : i32 to index
    %4 = memref.load %arg3[%3] : memref<2xf32, #tpu.memory_space<smem>>
    %c0 = arith.constant 0 : index
    %c0_1 = arith.constant 0 : index
    %c0_2 = arith.constant 0 : index
    %5 = vector.load %arg4[%c0, %c0_1, %c0_2] : memref<1x8x128xf32, #tpu.memory_space<vmem>>, vector<1x8x128xf32>
    %6 = vector.shape_cast %5 : vector<1x8x128xf32> to vector<8x128xf32>
    %c0_3 = arith.constant 0 : index
    %c0_4 = arith.constant 0 : index
    %c0_5 = arith.constant 0 : index
    %7 = vector.load %arg5[%c0_3, %c0_4, %c0_5] : memref<1x8x128xf32, #tpu.memory_space<vmem>>, vector<1x8x128xf32>
    %8 = vector.shape_cast %7 : vector<1x8x128xf32> to vector<8x128xf32>
    %9 = vector.broadcast %4 : f32 to vector<8x128xf32>
    %10 = arith.cmpf ogt, %8, %9 : vector<8x128xf32>
    %11 = arith.subf %6, %8 : vector<8x128xf32>
    %cst = arith.constant 0.000000e+00 : f32
    %12 = vector.broadcast %cst : f32 to vector<8x128xf32>
    %13 = arith.select %10, %11, %12 : vector<8x128xi1>, vector<8x128xf32>
    %14 = math.absf %13 : vector<8x128xf32>
    %cst_6 = arith.constant 1.000000e+00 : f32
    %15 = vector.broadcast %cst_6 : f32 to vector<8x128xf32>
    %16 = arith.minimumf %14, %15 : vector<8x128xf32>
    %cst_7 = arith.constant 5.000000e-01 : f32
    %17 = vector.broadcast %cst_7 : f32 to vector<8x128xf32>
    %18 = arith.mulf %17, %16 : vector<8x128xf32>
    %19 = arith.subf %14, %18 : vector<8x128xf32>
    %20 = arith.mulf %16, %19 : vector<8x128xf32>
    %21 = arith.extui %10 : vector<8x128xi1> to vector<8x128xi32>
    %22 = arith.sitofp %21 : vector<8x128xi32> to vector<8x128xf32>
    %c0_8 = arith.constant 0 : index
    %c0_9 = arith.constant 0 : index
    %c0_10 = arith.constant 0 : index
    %c0_11 = arith.constant 0 : index
    %23 = vector.load %arg6[%c0_8, %c0_9, %c0_10, %c0_11] : memref<1x1x8x128xf32, #tpu.memory_space<vmem>>, vector<1x1x8x128xf32>
    %24 = vector.shape_cast %23 : vector<1x1x8x128xf32> to vector<8x128xf32>
    %25 = vector.shape_cast %20 : vector<8x128xf32> to vector<1x8x1x128xf32>
    %cst_12 = arith.constant dense<0.000000e+00> : vector<8x128xf32>
    %26 = vector.multi_reduction <add>, %25, %cst_12 [0, 2] : vector<1x8x1x128xf32> to vector<8x128xf32>
    %27 = arith.addf %24, %26 : vector<8x128xf32>
    %c0_13 = arith.constant 0 : index
    %c0_14 = arith.constant 0 : index
    %c0_15 = arith.constant 0 : index
    %c0_16 = arith.constant 0 : index
    %28 = vector.load %arg6[%c0_13, %c0_14, %c0_15, %c0_16] : memref<1x1x8x128xf32, #tpu.memory_space<vmem>>, vector<1x1x8x128xf32>
    %29 = vector.shape_cast %28 : vector<1x1x8x128xf32> to vector<8x128xf32>
    %30 = vector.shape_cast %27 : vector<8x128xf32> to vector<1x1x8x128xf32>
    tpu.vector_store %arg6[%c0_13, %c0_14, %c0_15, %c0_16], %30 {strides = array<i32>} : memref<1x1x8x128xf32, #tpu.memory_space<vmem>>, vector<1x1x8x128xf32>,
    %c0_17 = arith.constant 0 : index
    %c0_18 = arith.constant 0 : index
    %c0_19 = arith.constant 0 : index
    %c0_20 = arith.constant 0 : index
    %31 = vector.load %arg7[%c0_17, %c0_18, %c0_19, %c0_20] : memref<1x1x8x128xf32, #tpu.memory_space<vmem>>, vector<1x1x8x128xf32>
    %32 = vector.shape_cast %31 : vector<1x1x8x128xf32> to vector<8x128xf32>
    %33 = vector.shape_cast %22 : vector<8x128xf32> to vector<1x8x1x128xf32>
    %cst_21 = arith.constant dense<0.000000e+00> : vector<8x128xf32>
    %34 = vector.multi_reduction <add>, %33, %cst_21 [0, 2] : vector<1x8x1x128xf32> to vector<8x128xf32>
    %35 = arith.addf %32, %34 : vector<8x128xf32>
    %c0_22 = arith.constant 0 : index
    %c0_23 = arith.constant 0 : index
    %c0_24 = arith.constant 0 : index
    %c0_25 = arith.constant 0 : index
    %36 = vector.load %arg7[%c0_22, %c0_23, %c0_24, %c0_25] : memref<1x1x8x128xf32, #tpu.memory_space<vmem>>, vector<1x1x8x128xf32>
    %37 = vector.shape_cast %36 : vector<1x1x8x128xf32> to vector<8x128xf32>
    %38 = vector.shape_cast %35 : vector<8x128xf32> to vector<1x1x8x128xf32>
    tpu.vector_store %arg7[%c0_22, %c0_23, %c0_24, %c0_25], %38 {strides = array<i32>} : memref<1x1x8x128xf32, #tpu.memory_space<vmem>>, vector<1x1x8x128xf32>,
    return
  }
  func.func @transform_0(%arg0: i32, %arg1: i32, %arg2: i32, %arg3: memref<2xf32, #tpu.memory_space<smem>>) -> (i32, i32, i32) {
    %c1_i32 = arith.constant 1 : i32
    %0 = arith.muli %arg1, %c1_i32 : i32
    %1 = arith.addi %0, %arg2 : i32
    %c0_i32 = arith.constant 0 : i32
    %c0_i32_0 = arith.constant 0 : i32
    return %arg0, %1, %c0_i32 : i32, i32, i32
  }
  func.func @transform_1(%arg0: i32, %arg1: i32, %arg2: i32, %arg3: memref<2xf32, #tpu.memory_space<smem>>) -> (i32, i32, i32) {
    %c1_i32 = arith.constant 1 : i32
    %0 = arith.muli %arg1, %c1_i32 : i32
    %1 = arith.addi %0, %arg2 : i32
    %c0_i32 = arith.constant 0 : i32
    %c0_i32_0 = arith.constant 0 : i32
    return %arg0, %1, %c0_i32 : i32, i32, i32
  }
  func.func @transform_2(%arg0: i32, %arg1: i32, %arg2: i32, %arg3: memref<2xf32, #tpu.memory_space<smem>>) -> (i32, i32, i32, i32) {
    %c0_i32 = arith.constant 0 : i32
    %c0_i32_0 = arith.constant 0 : i32
    %c0_i32_1 = arith.constant 0 : i32
    return %arg0, %arg1, %c0_i32, %c0_i32_0 : i32, i32, i32, i32
  }
  func.func @transform_3(%arg0: i32, %arg1: i32, %arg2: i32, %arg3: memref<2xf32, #tpu.memory_space<smem>>) -> (i32, i32, i32, i32) {
    %c0_i32 = arith.constant 0 : i32
    %c0_i32_0 = arith.constant 0 : i32
    %c0_i32_1 = arith.constant 0 : i32
    return %arg0, %arg1, %c0_i32, %c0_i32_0 : i32, i32, i32, i32
  }
}

</mosaic_0001>

<llo_original>
// kernel: loss_forward.2
$region0: #{loss_forward.2}
  #allocation0 [shape = 'u32[]', space=smem, size = 0x4, offset = 0x4, fixed_abs, tag = 'smem constant byte address 0x4 - core index']
  #allocation1 [shape = 'u32[72,128]{1,0:T(1,128)}', space=vmem, size = 0x9000, scoped, tag = 'internal scratch']
  #allocation2 [shape = 's32[1]{0}', space=sflag, size = 0x4, scoped, tag = 'scoped memory for loss_forward.2']
  #allocation3 [shape = 'u8[512]{0}', space=smem, size = 0x200, scoped, tag = 'prefetched SMEM operand 0']
  %s0 = inlined_call_operand.vmem [shape: f32[2], index: 0, kind: input, shape index: {}]
  %s1 = inlined_call_operand.vmem [shape: f32[2,16,128], index: 1, kind: input, shape index: {}]
  %s2 = inlined_call_operand.hbm [shape: f32[2,16,128], index: 2, kind: input, shape index: {}]
  %s3 = inlined_call_operand.vmem [shape: f32[2,1,8,128], index: 3, kind: output, shape index: {0}]
  %s4 = inlined_call_operand.vmem [shape: f32[2,1,8,128], index: 4, kind: output, shape index: {1}]
  %5 = xla_tuple %s3, %s4
  %s6 = sld [smem:[#allocation0]]
  $region57: #{loss_forward.2} parent=0
    _
  %s8 = ssub.s32 1, %s6
  %s9 = scalar_select 0, %s8, %s6
  %s11 = sshll.u32 %s0, 4
  %s12 = int_to_ptr.vmem [resolvable:$true] %s11
  %14 = dma.vmem_to_smem %s12, 16, [#allocation3], [#allocation2]
  %16 = dma.done [#allocation2], 16
  %17 = sfence
  $region1: #{loss_forward.2} parent=0
    #allocation4 [shape = 'u8[16384]{0}', space=vmem, size = 0x4000, scoped, tag = 'input window, operand 2']
    #allocation5 [shape = 's32[2]{0}', space=sflag, size = 0x8, scoped, tag = 'scoped memory for loss_forward.2']
    %18 = vsyncpa [#allocation5], 0
    %s19 = scalar_lea.sflag [#allocation5], 1
    %20 = vsyncpa %s19, 0
    loop: start=0, step=1, limit=4
    $region2: #{loss_forward.2} parent=1 // loop_pre_header
      _
    $region3: #{loss_forward.2} parent=1 // loop_header
      %s22 = sphi 0, %s26
      %p23 = scmp.ge.s32.totalorder %s22, 4
      %s29 = sphi 0, %s48
      %s30 = sphi 0, %s44
      %s31 = sphi 0, %s40
      %s32 = sphi 0, %s29
      %s33 = sphi 0, %s30
      %s34 = sphi 0, %s31
      %s35 = sphi 0, %s32
      %s36 = sphi 0, %s33
      %s37 = sphi 0, %s34
      %s55 = sphi 0, %s57
      %s58 = sphi 0, %s55
      %s59 = sphi 0, %s58
      %s75 = sphi 0, %s59
      %s85 = sphi 0, %s87
      %s88 = sphi 0, %s85
      %s89 = sphi 0, %s88
      %s105 = sphi 0, %s89
      %s113 = sphi 0, %s115
      %s116 = sphi 0, %s113
      %s117 = sphi 0, %s116
      %s133 = sphi 0, %s117
      %s141 = sphi 0, %s143
      %s144 = sphi 0, %s141
      %s145 = sphi 0, %s144
      %s161 = sphi 0, %s145
    $region4: #{loss_forward.2} parent=1 // loop_header_branch
      %25 = sbr.rel (%p23) target = $region8
    $region5: #{loss_forward.2} parent=1 // loop_body
      %s27 = ssub.s32 %s22, 1
      %s28 = ssub.s32 %s22, 2
      %s38 = sadd.s32 1, %s31
      %p39 = scmp.ge.s32.totalorder %s38, 1
      %s40 = scalar_select %p39, 0, %s38
      %s41 = sadd.s32 1, %s30
      %s42 = scalar_select %p39, %s41, %s30
      %p43 = scmp.ge.s32.totalorder %s42, 1
      %s44 = scalar_select %p43, 0, %s42
      %s45 = sadd.s32 1, %s29
      %s46 = scalar_select %p43, %s45, %s29
      %p47 = scmp.ge.s32.totalorder %s46, 2
      %s48 = scalar_select %p47, 0, %s46
      %s49 = sadd.s32 %s30, %s31
      %s50 = sadd.s32 %s44, %s40
      %s51 = ssub.s32 %s29, %s48
      %s52 = ssub.s32 %s49, %s50
      %s53 = sor.u32 %s51, %s52
      %p54 = scmp.eq.s32.totalorder %s53, 0
      %s56 = sadd.s32 %s55, 1
      %s57 = scalar_select %p54, %s55, %s56
      %p60 = pneg %p54
      %p61 = scmp.eq.s32.totalorder %s22, 1
      %p62 = por %p60, %p61
      %p63 = scmp.ne.s32.totalorder %s55, %s58
      %p64 = scmp.eq.s32.totalorder %s22, 0
      %p65 = por %p63, %p64
      %p66 = scmp.ne.s32.totalorder %s55, %s58
      %p67 = scmp.eq.s32.totalorder %s27, 1
      %p68 = por %p66, %p67
      %p69 = scmp.ne.s32.totalorder %s58, %s59
      %p70 = scmp.eq.s32.totalorder %s27, 0
      %p71 = por %p69, %p70
      %p72 = scmp.ne.s32.totalorder %s58, %s59
      %p73 = scmp.eq.s32.totalorder %s28, 1
      %p74 = por %p72, %p73
      %p76 = scmp.ne.s32.totalorder %s59, %s75
      %p77 = scmp.eq.s32.totalorder %s28, 0
      %p78 = por %p76, %p77
      %s79 = sadd.s32 %s30, %s31
      %s80 = sadd.s32 %s44, %s40
      %s81 = ssub.s32 %s29, %s48
      %s82 = ssub.s32 %s79, %s80
      %s83 = sor.u32 %s81, %s82
      %p84 = scmp.eq.s32.totalorder %s83, 0
      %s86 = sadd.s32 %s85, 1
      %s87 = scalar_select %p84, %s85, %s86
      %p90 = pneg %p84
      %p91 = scmp.eq.s32.totalorder %s22, 1
      %p92 = por %p90, %p91
      %p93 = scmp.ne.s32.totalorder %s85, %s88
      %p94 = scmp.eq.s32.totalorder %s22, 0
      %p95 = por %p93, %p94
      %p96 = scmp.ne.s32.totalorder %s85, %s88
      %p97 = scmp.eq.s32.totalorder %s27, 1
      %p98 = por %p96, %p97
      %p99 = scmp.ne.s32.totalorder %s88, %s89
      %p100 = scmp.eq.s32.totalorder %s27, 0
      %p101 = por %p99, %p100
      %p102 = scmp.ne.s32.totalorder %s88, %s89
      %p103 = scmp.eq.s32.totalorder %s28, 1
      %p104 = por %p102, %p103
      %p106 = scmp.ne.s32.totalorder %s89, %s105
      %p107 = scmp.eq.s32.totalorder %s28, 0
      %p108 = por %p106, %p107
      %s109 = ssub.s32 %s29, %s48
      %s110 = ssub.s32 %s30, %s44
      %s111 = sor.u32 %s109, %s110
      %p112 = scmp.eq.s32.totalorder %s111, 0
      %s114 = sadd.s32 %s113, 1
      %s115 = scalar_select %p112, %s113, %s114
      %p118 = pneg %p112
      %p119 = scmp.eq.s32.totalorder %s22, 1
      %p120 = por %p118, %p119
      %p121 = scmp.ne.s32.totalorder %s113, %s116
      %p122 = scmp.eq.s32.totalorder %s22, 0
      %p123 = por %p121, %p122
      %p124 = scmp.ne.s32.totalorder %s113, %s116
      %p125 = scmp.eq.s32.totalorder %s27, 1
      %p126 = por %p124, %p125
      %p127 = scmp.ne.s32.totalorder %s116, %s117
      %p128 = scmp.eq.s32.totalorder %s27, 0
      %p129 = por %p127, %p128
      %p130 = scmp.ne.s32.totalorder %s116, %s117
      %p131 = scmp.eq.s32.totalorder %s28, 1
      %p132 = por %p130, %p131
      %p134 = scmp.ne.s32.totalorder %s117, %s133
      %p135 = scmp.eq.s32.totalorder %s28, 0
      %p136 = por %p134, %p135
      %s137 = ssub.s32 %s29, %s48
      %s138 = ssub.s32 %s30, %s44
      %s139 = sor.u32 %s137, %s138
      %p140 = scmp.eq.s32.totalorder %s139, 0
      %s142 = sadd.s32 %s141, 1
      %s143 = scalar_select %p140, %s141, %s142
      %p146 = pneg %p140
      %p147 = scmp.eq.s32.totalorder %s22, 1
      %p148 = por %p146, %p147
      %p149 = scmp.ne.s32.totalorder %s141, %s144
      %p150 = scmp.eq.s32.totalorder %s22, 0
      %p151 = por %p149, %p150
      %p152 = scmp.ne.s32.totalorder %s141, %s144
      %p153 = scmp.eq.s32.totalorder %s27, 1
      %p154 = por %p152, %p153
      %p155 = scmp.ne.s32.totalorder %s144, %s145
      %p156 = scmp.eq.s32.totalorder %s27, 0
      %p157 = por %p155, %p156
      %p158 = scmp.ne.s32.totalorder %s144, %s145
      %p159 = scmp.eq.s32.totalorder %s28, 1
      %p160 = por %p158, %p159
      %p162 = scmp.ne.s32.totalorder %s145, %s161
      %p163 = scmp.eq.s32.totalorder %s28, 0
      %p164 = por %p162, %p163
      %p165 = scmp.le.s32.totalorder 1, %s22
      %p166 = scmp.lt.s32.totalorder %s22, 3
      %p167 = pnand %p165, %p166
      %p168 = pneg %p167
      // Predicated region
      $region9: #{loss_forward.2} parent=5 // pred_check
        _
      $region10: #{loss_forward.2} parent=5 // pred_check_branch
        %170 = sbr.rel (%p167) target = $region12
      $region11: #{loss_forward.2} parent=5 // pred_region
        %s171 = ssub.s32 %s22, 1
      $region12: #{loss_forward.2} parent=5 // pred_fallthru
        _
      %p172 = scmp.lt.s32.totalorder %s22, 2
      // Predicated region
      $region13: #{loss_forward.2} parent=5 // pred_check
        %p173 = pneg %p172
      $region14: #{loss_forward.2} parent=5 // pred_check_branch
        %175 = sbr.rel (%p173) target = $region16
      $region15: #{loss_forward.2} parent=5 // pred_region
        // Predicated region
        $region17: #{loss_forward.2} parent=15 // pred_check
          %p176 = pneg %p65
        $region18: #{loss_forward.2} parent=15 // pred_check_branch
          %178 = sbr.rel (%p176) target = $region20
        $region19: #{loss_forward.2} parent=15 // pred_region
          %s179 = sadd.s32 %s30, %s31
          %s180 = smul.u32 2, %s179
          %p181 = scmp.lt.s32.totalorder %s29, 1
          %s182 = scalar_select %p181, %s29, 1
          %p183 = scmp.lt.s32.totalorder %s180, 1
          %s184 = scalar_select %p183, %s180, 1
          %s185 = smul.addr %s182, 2
          %s186 = sadd.s32 %s184, %s185
          %s187 = smul.addr %s186, 8
          %s188 = scalar_lea.vmem %s1, %s187
          %s189 = sadd.s32 %s30, %s31
          %s190 = smul.u32 2, %s189
        $region20: #{loss_forward.2} parent=15 // pred_fallthru
          _
        // Predicated region
        $region21: #{loss_forward.2} parent=15 // pred_check
          %p191 = pneg %p95
        $region22: #{loss_forward.2} parent=15 // pred_check_branch
          %193 = sbr.rel (%p191) target = $region24
        $region23: #{loss_forward.2} parent=15 // pred_region
          %s194 = sand.u32 %s85, 1
          %s195 = scalar_lea.sflag [#allocation5], %s194
          %s196 = sand.u32 %s85, 1
          %s197 = smul.addr %s196, 16
          %s198 = scalar_lea.vmem [#allocation4], %s197
          %s199 = sadd.s32 %s30, %s31
          %s200 = smul.u32 2, %s199
          %202 = vsyncadd %s195, 0
          %s203 = smul.addr %s29, 2
          %s204 = sadd.s32 %s200, %s203
          %s205 = smul.addr %s204, 8
          %s206 = scalar_lea.hbm %s2, %s205
          %s207 = sshll.u32 %s206, 4
          %s208 = int_to_ptr.hbm [resolvable:$true] %s207
          %s209 = sshll.u32 %s198, 4
          %s210 = int_to_ptr.vmem [resolvable:$true] %s209
          %215 = dma.hbm_to_vmem [thread:$0]  %s208, 256, %s210, %s195, 128, 128, 8
        $region24: #{loss_forward.2} parent=15 // pred_fallthru
          _
      $region16: #{loss_forward.2} parent=5 // pred_fallthru
        _
      %p216 = scmp.le.s32.totalorder 1, %s22
      %p217 = scmp.lt.s32.totalorder %s22, 3
      %p218 = pnand %p216, %p217
      %p219 = pneg %p218
      // Predicated region
      $region25: #{loss_forward.2} parent=5 // pred_check
        _
      $region26: #{loss_forward.2} parent=5 // pred_check_branch
        %221 = sbr.rel (%p218) target = $region28
      $region27: #{loss_forward.2} parent=5 // pred_region
        %s222 = ssub.s32 %s22, 1
        %s223 = sand.u32 %s88, 1
        %s224 = scalar_lea.sflag [#allocation5], %s223
        %s225 = sand.u32 %s88, 1
        %s226 = smul.addr %s225, 16
        %s227 = scalar_lea.vmem [#allocation4], %s226
        // Predicated region
        $region29: #{loss_forward.2} parent=27 // pred_check
          %p228 = pneg %p101
        $region30: #{loss_forward.2} parent=27 // pred_check_branch
          %230 = sbr.rel (%p228) target = $region32
        $region31: #{loss_forward.2} parent=27 // pred_region
          %232 = dma.done %s224, 256
        $region32: #{loss_forward.2} parent=27 // pred_fallthru
          _
        %s233 = sadd.s32 %s33, %s34
        %s234 = smul.u32 2, %s233
        %p235 = scmp.lt.s32.totalorder %s32, 1
        %s236 = scalar_select %p235, %s32, 1
        %p237 = scmp.lt.s32.totalorder %s234, 1
        %s238 = scalar_select %p237, %s234, 1
        %s239 = smul.addr %s236, 2
        %s240 = sadd.s32 %s238, %s239
        %s241 = smul.addr %s240, 8
        %s242 = scalar_lea.vmem %s1, %s241
        %p243 = pneg %p71
        %p244 = pneg %p68
        %s245 = sand.u32 %s88, 1
        %s246 = scalar_lea.sflag [#allocation5], %s245
        %s247 = sand.u32 %s88, 1
        %s248 = smul.addr %s247, 16
        %s249 = scalar_lea.vmem [#allocation4], %s248
        %p250 = pneg %p101
        %p251 = pneg %p98
        %p252 = pneg %p129
        %p253 = pneg %p126
        %p254 = scmp.lt.s32.totalorder %s32, 1
        %s255 = scalar_select %p254, %s32, 1
        %p256 = scmp.lt.s32.totalorder %s33, 0
        %s257 = scalar_select %p256, %s33, 0
        %s258 = sadd.s32 %s257, %s255
        %s259 = smul.addr %s258, 8
        %s260 = scalar_lea.vmem %s3, %s259
        %p261 = pneg %p157
        %p262 = pneg %p154
        %p263 = scmp.lt.s32.totalorder %s32, 1
        %s264 = scalar_select %p263, %s32, 1
        %p265 = scmp.lt.s32.totalorder %s33, 0
        %s266 = scalar_select %p265, %s33, 0
        %s267 = sadd.s32 %s266, %s264
        %s268 = smul.addr %s267, 8
        %s269 = scalar_lea.vmem %s4, %s268
        %s270 = sadd.s32 %s33, %s34
        %s271 = smul.u32 2, %s270
        %p272 = scmp.lt.s32.totalorder %s32, 1
        %s273 = scalar_select %p272, %s32, 1
        %p274 = scmp.lt.s32.totalorder %s271, 1
        %s275 = scalar_select %p274, %s271, 1
        %s276 = smul.addr %s273, 2
        %s277 = sadd.s32 %s275, %s276
        %s278 = smul.addr %s277, 8
        %s279 = scalar_lea.vmem %s1, %s278
        %s280 = sadd.s32 %s33, %s34
        %s281 = smul.u32 2, %s280
        %s282 = sadd.s32 %s33, %s34
        %s283 = smul.u32 2, %s282
        %p284 = scmp.lt.s32.totalorder %s32, 1
        %s285 = scalar_select %p284, %s32, 1
        %p286 = scmp.lt.s32.totalorder %s33, 0
        %s287 = scalar_select %p286, %s33, 0
        %s288 = sadd.s32 %s287, %s285
        %s289 = smul.addr %s288, 8
        %s290 = scalar_lea.vmem %s3, %s289
        %p291 = scmp.lt.s32.totalorder %s32, 1
        %s292 = scalar_select %p291, %s32, 1
        %p293 = scmp.lt.s32.totalorder %s33, 0
        %s294 = scalar_select %p293, %s33, 0
        %s295 = sadd.s32 %s294, %s292
        %s296 = smul.addr %s295, 8
        %s297 = scalar_lea.vmem %s4, %s296
        %p298 = scmp.eq.s32.totalorder %s34, 0
        // Predicated region
        $region33: #{loss_forward.2} parent=27 // pred_check
          %p299 = pneg %p298
        $region34: #{loss_forward.2} parent=27 // pred_check_branch
          %301 = sbr.rel (%p299) target = $region36
        $region35: #{loss_forward.2} parent=27 // pred_region
          %302 = vst [vmem:[%s290] sm:$0xff] 0.0
          %303 = vst [vmem:[%s297] sm:$0xff] 0.0
        $region36: #{loss_forward.2} parent=27 // pred_fallthru
          _
        %s304 = sld [smem:[#allocation3 + %s32]]
        %v305 = vld [vmem:[%s279] sm:$0xff]
        %v306 = vld [vmem:[%s279 + $0x8] sm:$0xff]
        %v307 = vld [vmem:[%s227] sm:$0xff]
        %v308 = vld [vmem:[%s227 + $0x8] sm:$0xff]
        %v309 = vstv %s304
        %vm310 = vcmp.gt.f32.partialorder %v307, %v309
        %vm311 = vcmp.gt.f32.partialorder %v308, %v309
        %v312 = vsub.f32 %v305, %v307
        %v313 = vsub.f32 %v306, %v308
        %v314 = vsel %vm310, %v312, 0.0
        %v315 = vsel %vm311, %v313, 0.0
        %v316 = vand.u32 2147483647, %v314
        %v317 = vand.u32 2147483647, %v315
        %v318 = vmin.f32 %v316, 1.0
        %v319 = vmin.f32 %v317, 1.0
        %v320 = vmul.f32 %v318, 0.5
        %v321 = vmul.f32 %v319, 0.5
        %v322 = vsub.f32 %v316, %v320
        %v323 = vsub.f32 %v317, %v321
        %v324 = vmul.f32 %v318, %v322
        %v325 = vmul.f32 %v319, %v323
        %v326 = vsel %vm310, 1, 0
        %v327 = vsel %vm311, 1, 0
        %v328 = vcvt.s32.f32 %v326
        %v329 = vcvt.s32.f32 %v327
        %v330 = vld [vmem:[%s290] sm:$0xff]
        %v333 = vrot.slane %v324, 1
        %v334 = vrot.slane %v324, 2
        %v335 = vrot.slane %v324, 3
        %v336 = vrot.slane %v324, 4
        %v337 = vrot.slane %v324, 5
        %v338 = vrot.slane %v324, 6
        %v339 = vrot.slane %v324, 7
        %v340 = vrot.slane %v325, 1
        %v341 = vrot.slane %v325, 2
        %v342 = vrot.slane %v325, 3
        %v343 = vrot.slane %v325, 4
        %v344 = vrot.slane %v325, 5
        %v345 = vrot.slane %v325, 6
        %v346 = vrot.slane %v325, 7
        %vm361 = vcmask 1040384
        %v362 = vsel %vm361, %v324, 0.0
        %v363 = vsel %vm361, %v325, 0.0
        %v364 = vadd.f32 %v362, %v363
        %v365 = vrot.slane %v364, 4
        %v366 = vadd.f32 %v364, %v365
        %v367 = vrot.slane %v366, 2
        %v368 = vadd.f32 %v366, %v367
        %v369 = vrot.slane %v368, 1
        %v370 = vadd.f32 %v368, %v369
        %v371 = vsel %vm361, %v333, 0.0
        %v372 = vsel %vm361, %v340, 0.0
        %v373 = vadd.f32 %v371, %v372
        %v374 = vrot.slane %v373, 4
        %v375 = vadd.f32 %v373, %v374
        %v376 = vrot.slane %v375, 2
        %v377 = vadd.f32 %v375, %v376
        %v378 = vrot.slane %v377, 1
        %v379 = vadd.f32 %v377, %v378
        %v380 = vsel %vm361, %v334, 0.0
        %v381 = vsel %vm361, %v341, 0.0
        %v382 = vadd.f32 %v380, %v381
        %v383 = vrot.slane %v382, 4
        %v384 = vadd.f32 %v382, %v383
        %v385 = vrot.slane %v384, 2
        %v386 = vadd.f32 %v384, %v385
        %v387 = vrot.slane %v386, 1
        %v388 = vadd.f32 %v386, %v387
        %v389 = vsel %vm361, %v335, 0.0
        %v390 = vsel %vm361, %v342, 0.0
        %v391 = vadd.f32 %v389, %v390
        %v392 = vrot.slane %v391, 4
        %v393 = vadd.f32 %v391, %v392
        %v394 = vrot.slane %v393, 2
        %v395 = vadd.f32 %v393, %v394
        %v396 = vrot.slane %v395, 1
        %v397 = vadd.f32 %v395, %v396
        %v398 = vsel %vm361, %v336, 0.0
        %v399 = vsel %vm361, %v343, 0.0
        %v400 = vadd.f32 %v398, %v399
        %v401 = vrot.slane %v400, 4
        %v402 = vadd.f32 %v400, %v401
        %v403 = vrot.slane %v402, 2
        %v404 = vadd.f32 %v402, %v403
        %v405 = vrot.slane %v404, 1
        %v406 = vadd.f32 %v404, %v405
        %v407 = vsel %vm361, %v337, 0.0
        %v408 = vsel %vm361, %v344, 0.0
        %v409 = vadd.f32 %v407, %v408
        %v410 = vrot.slane %v409, 4
        %v411 = vadd.f32 %v409, %v410
        %v412 = vrot.slane %v411, 2
        %v413 = vadd.f32 %v411, %v412
        %v414 = vrot.slane %v413, 1
        %v415 = vadd.f32 %v413, %v414
        %v416 = vsel %vm361, %v338, 0.0
        %v417 = vsel %vm361, %v345, 0.0
        %v418 = vadd.f32 %v416, %v417
        %v419 = vrot.slane %v418, 4
        %v420 = vadd.f32 %v418, %v419
        %v421 = vrot.slane %v420, 2
        %v422 = vadd.f32 %v420, %v421
        %v423 = vrot.slane %v422, 1
        %v424 = vadd.f32 %v422, %v423
        %v425 = vsel %vm361, %v339, 0.0
        %v426 = vsel %vm361, %v346, 0.0
        %v427 = vadd.f32 %v425, %v426
        %v428 = vrot.slane %v427, 4
        %v429 = vadd.f32 %v427, %v428
        %v430 = vrot.slane %v429, 2
        %v431 = vadd.f32 %v429, %v430
        %v432 = vrot.slane %v431, 1
        %v433 = vadd.f32 %v431, %v432
        %vm442 = vcmask 1041409
        %v443 = vsel %vm442, %v379, %v370
        %vm444 = vcmask 1042434
        %v445 = vsel %vm444, %v388, %v443
        %vm446 = vcmask 1043459
        %v447 = vsel %vm446, %v397, %v445
        %vm448 = vcmask 1044484
        %v449 = vsel %vm448, %v406, %v447
        %vm450 = vcmask 1045509
        %v451 = vsel %vm450, %v415, %v449
        %vm452 = vcmask 1046534
        %v453 = vsel %vm452, %v424, %v451
        %vm454 = vcmask 1047559
        %v455 = vsel %vm454, %v433, %v453
        %v457 = vadd.f32 %v330, %v455
        %458 = vst [vmem:[%s290] sm:$0xff] %v457
        %v459 = vld [vmem:[%s297] sm:$0xff]
        %v462 = vrot.slane %v328, 1
        %v463 = vrot.slane %v328, 2
        %v464 = vrot.slane %v328, 3
        %v465 = vrot.slane %v328, 4
        %v466 = vrot.slane %v328, 5
        %v467 = vrot.slane %v328, 6
        %v468 = vrot.slane %v328, 7
        %v469 = vrot.slane %v329, 1
        %v470 = vrot.slane %v329, 2
        %v471 = vrot.slane %v329, 3
        %v472 = vrot.slane %v329, 4
        %v473 = vrot.slane %v329, 5
        %v474 = vrot.slane %v329, 6
        %v475 = vrot.slane %v329, 7
        %v490 = vsel %vm361, %v328, 0.0
        %v491 = vsel %vm361, %v329, 0.0
        %v492 = vadd.f32 %v490, %v491
        %v493 = vrot.slane %v492, 4
        %v494 = vadd.f32 %v492, %v493
        %v495 = vrot.slane %v494, 2
        %v496 = vadd.f32 %v494, %v495
        %v497 = vrot.slane %v496, 1
        %v498 = vadd.f32 %v496, %v497
        %v499 = vsel %vm361, %v462, 0.0
        %v500 = vsel %vm361, %v469, 0.0
        %v501 = vadd.f32 %v499, %v500
        %v502 = vrot.slane %v501, 4
        %v503 = vadd.f32 %v501, %v502
        %v504 = vrot.slane %v503, 2
        %v505 = vadd.f32 %v503, %v504
        %v506 = vrot.slane %v505, 1
        %v507 = vadd.f32 %v505, %v506
        %v508 = vsel %vm361, %v463, 0.0
        %v509 = vsel %vm361, %v470, 0.0
        %v510 = vadd.f32 %v508, %v509
        %v511 = vrot.slane %v510, 4
        %v512 = vadd.f32 %v510, %v511
        %v513 = vrot.slane %v512, 2
        %v514 = vadd.f32 %v512, %v513
        %v515 = vrot.slane %v514, 1
        %v516 = vadd.f32 %v514, %v515
        %v517 = vsel %vm361, %v464, 0.0
        %v518 = vsel %vm361, %v471, 0.0
        %v519 = vadd.f32 %v517, %v518
        %v520 = vrot.slane %v519, 4
        %v521 = vadd.f32 %v519, %v520
        %v522 = vrot.slane %v521, 2
        %v523 = vadd.f32 %v521, %v522
        %v524 = vrot.slane %v523, 1
        %v525 = vadd.f32 %v523, %v524
        %v526 = vsel %vm361, %v465, 0.0
        %v527 = vsel %vm361, %v472, 0.0
        %v528 = vadd.f32 %v526, %v527
        %v529 = vrot.slane %v528, 4
        %v530 = vadd.f32 %v528, %v529
        %v531 = vrot.slane %v530, 2
        %v532 = vadd.f32 %v530, %v531
        %v533 = vrot.slane %v532, 1
        %v534 = vadd.f32 %v532, %v533
        %v535 = vsel %vm361, %v466, 0.0
        %v536 = vsel %vm361, %v473, 0.0
        %v537 = vadd.f32 %v535, %v536
        %v538 = vrot.slane %v537, 4
        %v539 = vadd.f32 %v537, %v538
        %v540 = vrot.slane %v539, 2
        %v541 = vadd.f32 %v539, %v540
        %v542 = vrot.slane %v541, 1
        %v543 = vadd.f32 %v541, %v542
        %v544 = vsel %vm361, %v467, 0.0
        %v545 = vsel %vm361, %v474, 0.0
        %v546 = vadd.f32 %v544, %v545
        %v547 = vrot.slane %v546, 4
        %v548 = vadd.f32 %v546, %v547
        %v549 = vrot.slane %v548, 2
        %v550 = vadd.f32 %v548, %v549
        %v551 = vrot.slane %v550, 1
        %v552 = vadd.f32 %v550, %v551
        %v553 = vsel %vm361, %v468, 0.0
        %v554 = vsel %vm361, %v475, 0.0
        %v555 = vadd.f32 %v553, %v554
        %v556 = vrot.slane %v555, 4
        %v557 = vadd.f32 %v555, %v556
        %v558 = vrot.slane %v557, 2
        %v559 = vadd.f32 %v557, %v558
        %v560 = vrot.slane %v559, 1
        %v561 = vadd.f32 %v559, %v560
        %v570 = vsel %vm442, %v507, %v498
        %v571 = vsel %vm444, %v516, %v570
        %v572 = vsel %vm446, %v525, %v571
        %v573 = vsel %vm448, %v534, %v572
        %v574 = vsel %vm450, %v543, %v573
        %v575 = vsel %vm452, %v552, %v574
        %v576 = vsel %vm454, %v561, %v575
        %v578 = vadd.f32 %v459, %v576
        %579 = vst [vmem:[%s297] sm:$0xff] %v578
        %p580 = scmp.lt.s32.totalorder %s32, 1
        %s581 = scalar_select %p580, %s32, 1
        %p582 = scmp.lt.s32.totalorder %s33, 0
        %s583 = scalar_select %p582, %s33, 0
        %s584 = sadd.s32 %s583, %s581
        %s585 = smul.addr %s584, 8
        %s586 = scalar_lea.vmem %s3, %s585
        %p587 = scmp.lt.s32.totalorder %s32, 1
        %s588 = scalar_select %p587, %s32, 1
        %p589 = scmp.lt.s32.totalorder %s33, 0
        %s590 = scalar_select %p589, %s33, 0
        %s591 = sadd.s32 %s590, %s588
        %s592 = smul.addr %s591, 8
        %s593 = scalar_lea.vmem %s4, %s592
        // Predicated region
        $region37: #{loss_forward.2} parent=27 // pred_check
          %p594 = pneg %p126
        $region38: #{loss_forward.2} parent=27 // pred_check_branch
          %596 = sbr.rel (%p594) target = $region40
        $region39: #{loss_forward.2} parent=27 // pred_region
          _
        $region40: #{loss_forward.2} parent=27 // pred_fallthru
          _
        // Predicated region
        $region41: #{loss_forward.2} parent=27 // pred_check
          %p597 = pneg %p154
        $region42: #{loss_forward.2} parent=27 // pred_check_branch
          %599 = sbr.rel (%p597) target = $region44
        $region43: #{loss_forward.2} parent=27 // pred_region
          _
        $region44: #{loss_forward.2} parent=27 // pred_fallthru
          _
      $region28: #{loss_forward.2} parent=5 // pred_fallthru
        _
      %p600 = scmp.le.s32.totalorder 2, %s22
      // Predicated region
      $region45: #{loss_forward.2} parent=5 // pred_check
        %p601 = pneg %p600
      $region46: #{loss_forward.2} parent=5 // pred_check_branch
        %603 = sbr.rel (%p601) target = $region48
      $region47: #{loss_forward.2} parent=5 // pred_region
        %s604 = ssub.s32 %s22, 2
        // Predicated region
        $region49: #{loss_forward.2} parent=47 // pred_check
          %p605 = pneg %p132
        $region50: #{loss_forward.2} parent=47 // pred_check_branch
          %607 = sbr.rel (%p605) target = $region52
        $region51: #{loss_forward.2} parent=47 // pred_region
          %p608 = scmp.lt.s32.totalorder %s35, 1
          %s609 = scalar_select %p608, %s35, 1
          %p610 = scmp.lt.s32.totalorder %s36, 0
          %s611 = scalar_select %p610, %s36, 0
          %s612 = sadd.s32 %s611, %s609
          %s613 = smul.addr %s612, 8
          %s614 = scalar_lea.vmem %s3, %s613
        $region52: #{loss_forward.2} parent=47 // pred_fallthru
          _
        // Predicated region
        $region53: #{loss_forward.2} parent=47 // pred_check
          %p615 = pneg %p160
        $region54: #{loss_forward.2} parent=47 // pred_check_branch
          %617 = sbr.rel (%p615) target = $region56
        $region55: #{loss_forward.2} parent=47 // pred_region
          %p618 = scmp.lt.s32.totalorder %s35, 1
          %s619 = scalar_select %p618, %s35, 1
          %p620 = scmp.lt.s32.totalorder %s36, 0
          %s621 = scalar_select %p620, %s36, 0
          %s622 = sadd.s32 %s621, %s619
          %s623 = smul.addr %s622, 8
          %s624 = scalar_lea.vmem %s4, %s623
        $region56: #{loss_forward.2} parent=47 // pred_fallthru
          _
      $region48: #{loss_forward.2} parent=5 // pred_fallthru
        _
    $region6: #{loss_forward.2} parent=1 // loop_footer
      %s26 = sadd.s32 1, %s22
    $region7: #{loss_forward.2} parent=1 // loop_footer_branch
      %21 = sbr.rel target = $region3
    $region8: #{loss_forward.2} parent=1 // loop_exit
      _
    %625 = vsyncpa [#allocation5], 1
    %s626 = scalar_lea.sflag [#allocation5], 1
    %627 = vsyncpa %s626, 1

// kernel: loss_forward.3
$region0: #{loss_forward.3}
  #allocation0 [shape = 'u32[]', space=smem, size = 0x4, offset = 0x4, fixed_abs, tag = 'smem constant byte address 0x4 - core index']
  #allocation1 [shape = 'u32[72,128]{1,0:T(1,128)}', space=vmem, size = 0x9000, scoped, tag = 'internal scratch']
  #allocation2 [shape = 's32[1]{0}', space=sflag, size = 0x4, scoped, tag = 'scoped memory for loss_forward.3']
  #allocation3 [shape = 'u8[512]{0}', space=smem, size = 0x200, scoped, tag = 'prefetched SMEM operand 0']
  %s0 = inlined_call_operand.vmem [shape: f32[2], index: 0, kind: input, shape index: {}]
  %s1 = inlined_call_operand.hbm [shape: f32[2,8,128], index: 1, kind: input, shape index: {}]
  %s2 = inlined_call_operand.hbm [shape: f32[2,8,128], index: 2, kind: input, shape index: {}]
  %s3 = inlined_call_operand.vmem [shape: f32[2,1,8,128], index: 3, kind: output, shape index: {0}]
  %s4 = inlined_call_operand.vmem [shape: f32[2,1,8,128], index: 4, kind: output, shape index: {1}]
  %5 = xla_tuple %s3, %s4
  %s6 = sld [smem:[#allocation0]]
  $region61: #{loss_forward.3} parent=0
    _
  %s8 = ssub.s32 1, %s6
  %s9 = scalar_select 0, %s8, %s6
  %s11 = sshll.u32 %s0, 4
  %s12 = int_to_ptr.vmem [resolvable:$true] %s11
  %14 = dma.vmem_to_smem %s12, 16, [#allocation3], [#allocation2]
  %16 = dma.done [#allocation2], 16
  %17 = sfence
  $region1: #{loss_forward.3} parent=0
    #allocation4 [shape = 'u8[8192]{0}', space=vmem, size = 0x2000, scoped, tag = 'input window, operand 1']
    #allocation5 [shape = 's32[2]{0}', space=sflag, size = 0x8, scoped, tag = 'scoped memory for loss_forward.3']
    #allocation6 [shape = 'u8[8192]{0}', space=vmem, size = 0x2000, scoped, tag = 'input window, operand 2']
    #allocation7 [shape = 's32[2]{0}', space=sflag, size = 0x8, scoped, tag = 'scoped memory for loss_forward.3']
    %18 = vsyncpa [#allocation5], 0
    %s19 = scalar_lea.sflag [#allocation5], 1
    %20 = vsyncpa %s19, 0
    %21 = vsyncpa [#allocation7], 0
    %s22 = scalar_lea.sflag [#allocation7], 1
    %23 = vsyncpa %s22, 0
    loop: start=0, step=1, limit=4
    $region2: #{loss_forward.3} parent=1 // loop_pre_header
      _
    $region3: #{loss_forward.3} parent=1 // loop_header
      %s25 = sphi 0, %s29
      %p26 = scmp.ge.s32.totalorder %s25, 4
      %s32 = sphi 0, %s51
      %s33 = sphi 0, %s47
      %s34 = sphi 0, %s43
      %s35 = sphi 0, %s32
      %s36 = sphi 0, %s33
      %s37 = sphi 0, %s34
      %s38 = sphi 0, %s35
      %s39 = sphi 0, %s36
      %s40 = sphi 0, %s37
      %s58 = sphi 0, %s60
      %s61 = sphi 0, %s58
      %s62 = sphi 0, %s61
      %s78 = sphi 0, %s62
      %s88 = sphi 0, %s90
      %s91 = sphi 0, %s88
      %s92 = sphi 0, %s91
      %s108 = sphi 0, %s92
      %s116 = sphi 0, %s118
      %s119 = sphi 0, %s116
      %s120 = sphi 0, %s119
      %s136 = sphi 0, %s120
      %s144 = sphi 0, %s146
      %s147 = sphi 0, %s144
      %s148 = sphi 0, %s147
      %s164 = sphi 0, %s148
    $region4: #{loss_forward.3} parent=1 // loop_header_branch
      %28 = sbr.rel (%p26) target = $region8
    $region5: #{loss_forward.3} parent=1 // loop_body
      %s30 = ssub.s32 %s25, 1
      %s31 = ssub.s32 %s25, 2
      %s41 = sadd.s32 1, %s34
      %p42 = scmp.ge.s32.totalorder %s41, 1
      %s43 = scalar_select %p42, 0, %s41
      %s44 = sadd.s32 1, %s33
      %s45 = scalar_select %p42, %s44, %s33
      %p46 = scmp.ge.s32.totalorder %s45, 1
      %s47 = scalar_select %p46, 0, %s45
      %s48 = sadd.s32 1, %s32
      %s49 = scalar_select %p46, %s48, %s32
      %p50 = scmp.ge.s32.totalorder %s49, 2
      %s51 = scalar_select %p50, 0, %s49
      %s52 = sadd.s32 %s33, %s34
      %s53 = sadd.s32 %s47, %s43
      %s54 = ssub.s32 %s32, %s51
      %s55 = ssub.s32 %s52, %s53
      %s56 = sor.u32 %s54, %s55
      %p57 = scmp.eq.s32.totalorder %s56, 0
      %s59 = sadd.s32 %s58, 1
      %s60 = scalar_select %p57, %s58, %s59
      %p63 = pneg %p57
      %p64 = scmp.eq.s32.totalorder %s25, 1
      %p65 = por %p63, %p64
      %p66 = scmp.ne.s32.totalorder %s58, %s61
      %p67 = scmp.eq.s32.totalorder %s25, 0
      %p68 = por %p66, %p67
      %p69 = scmp.ne.s32.totalorder %s58, %s61
      %p70 = scmp.eq.s32.totalorder %s30, 1
      %p71 = por %p69, %p70
      %p72 = scmp.ne.s32.totalorder %s61, %s62
      %p73 = scmp.eq.s32.totalorder %s30, 0
      %p74 = por %p72, %p73
      %p75 = scmp.ne.s32.totalorder %s61, %s62
      %p76 = scmp.eq.s32.totalorder %s31, 1
      %p77 = por %p75, %p76
      %p79 = scmp.ne.s32.totalorder %s62, %s78
      %p80 = scmp.eq.s32.totalorder %s31, 0
      %p81 = por %p79, %p80
      %s82 = sadd.s32 %s33, %s34
      %s83 = sadd.s32 %s47, %s43
      %s84 = ssub.s32 %s32, %s51
      %s85 = ssub.s32 %s82, %s83
      %s86 = sor.u32 %s84, %s85
      %p87 = scmp.eq.s32.totalorder %s86, 0
      %s89 = sadd.s32 %s88, 1
      %s90 = scalar_select %p87, %s88, %s89
      %p93 = pneg %p87
      %p94 = scmp.eq.s32.totalorder %s25, 1
      %p95 = por %p93, %p94
      %p96 = scmp.ne.s32.totalorder %s88, %s91
      %p97 = scmp.eq.s32.totalorder %s25, 0
      %p98 = por %p96, %p97
      %p99 = scmp.ne.s32.totalorder %s88, %s91
      %p100 = scmp.eq.s32.totalorder %s30, 1
      %p101 = por %p99, %p100
      %p102 = scmp.ne.s32.totalorder %s91, %s92
      %p103 = scmp.eq.s32.totalorder %s30, 0
      %p104 = por %p102, %p103
      %p105 = scmp.ne.s32.totalorder %s91, %s92
      %p106 = scmp.eq.s32.totalorder %s31, 1
      %p107 = por %p105, %p106
      %p109 = scmp.ne.s32.totalorder %s92, %s108
      %p110 = scmp.eq.s32.totalorder %s31, 0
      %p111 = por %p109, %p110
      %s112 = ssub.s32 %s32, %s51
      %s113 = ssub.s32 %s33, %s47
      %s114 = sor.u32 %s112, %s113
      %p115 = scmp.eq.s32.totalorder %s114, 0
      %s117 = sadd.s32 %s116, 1
      %s118 = scalar_select %p115, %s116, %s117
      %p121 = pneg %p115
      %p122 = scmp.eq.s32.totalorder %s25, 1
      %p123 = por %p121, %p122
      %p124 = scmp.ne.s32.totalorder %s116, %s119
      %p125 = scmp.eq.s32.totalorder %s25, 0
      %p126 = por %p124, %p125
      %p127 = scmp.ne.s32.totalorder %s116, %s119
      %p128 = scmp.eq.s32.totalorder %s30, 1
      %p129 = por %p127, %p128
      %p130 = scmp.ne.s32.totalorder %s119, %s120
      %p131 = scmp.eq.s32.totalorder %s30, 0
      %p132 = por %p130, %p131
      %p133 = scmp.ne.s32.totalorder %s119, %s120
      %p134 = scmp.eq.s32.totalorder %s31, 1
      %p135 = por %p133, %p134
      %p137 = scmp.ne.s32.totalorder %s120, %s136
      %p138 = scmp.eq.s32.totalorder %s31, 0
      %p139 = por %p137, %p138
      %s140 = ssub.s32 %s32, %s51
      %s141 = ssub.s32 %s33, %s47
      %s142 = sor.u32 %s140, %s141
      %p143 = scmp.eq.s32.totalorder %s142, 0
      %s145 = sadd.s32 %s144, 1
      %s146 = scalar_select %p143, %s144, %s145
      %p149 = pneg %p143
      %p150 = scmp.eq.s32.totalorder %s25, 1
      %p151 = por %p149, %p150
      %p152 = scmp.ne.s32.totalorder %s144, %s147
      %p153 = scmp.eq.s32.totalorder %s25, 0
      %p154 = por %p152, %p153
      %p155 = scmp.ne.s32.totalorder %s144, %s147
      %p156 = scmp.eq.s32.totalorder %s30, 1
      %p157 = por %p155, %p156
      %p158 = scmp.ne.s32.totalorder %s147, %s148
      %p159 = scmp.eq.s32.totalorder %s30, 0
      %p160 = por %p158, %p159
      %p161 = scmp.ne.s32.totalorder %s147, %s148
      %p162 = scmp.eq.s32.totalorder %s31, 1
      %p163 = por %p161, %p162
      %p165 = scmp.ne.s32.totalorder %s148, %s164
      %p166 = scmp.eq.s32.totalorder %s31, 0
      %p167 = por %p165, %p166
      %p168 = scmp.le.s32.totalorder 1, %s25
      %p169 = scmp.lt.s32.totalorder %s25, 3
      %p170 = pnand %p168, %p169
      %p171 = pneg %p170
      // Predicated region
      $region9: #{loss_forward.3} parent=5 // pred_check
        _
      $region10: #{loss_forward.3} parent=5 // pred_check_branch
        %173 = sbr.rel (%p170) target = $region12
      $region11: #{loss_forward.3} parent=5 // pred_region
        %s174 = ssub.s32 %s25, 1
      $region12: #{loss_forward.3} parent=5 // pred_fallthru
        _
      %p175 = scmp.lt.s32.totalorder %s25, 2
      // Predicated region
      $region13: #{loss_forward.3} parent=5 // pred_check
        %p176 = pneg %p175
      $region14: #{loss_forward.3} parent=5 // pred_check_branch
        %178 = sbr.rel (%p176) target = $region16
      $region15: #{loss_forward.3} parent=5 // pred_region
        // Predicated region
        $region17: #{loss_forward.3} parent=15 // pred_check
          %p179 = pneg %p68
        $region18: #{loss_forward.3} parent=15 // pred_check_branch
          %181 = sbr.rel (%p179) target = $region20
        $region19: #{loss_forward.3} parent=15 // pred_region
          %s182 = sand.u32 %s58, 1
          %s183 = scalar_lea.sflag [#allocation5], %s182
          %s184 = sand.u32 %s58, 1
          %s185 = smul.addr %s184, 8
          %s186 = scalar_lea.vmem [#allocation4], %s185
          %s187 = sadd.s32 %s33, %s34
          %189 = vsyncadd %s183, 0
          %s190 = sadd.s32 %s187, %s32
          %s191 = smul.addr %s190, 8
          %s192 = scalar_lea.hbm %s1, %s191
          %s194 = sshll.u32 %s192, 4
          %s195 = int_to_ptr.hbm [resolvable:$true] %s194
          %s196 = sshll.u32 %s186, 4
          %s197 = int_to_ptr.vmem [resolvable:$true] %s196
          %199 = dma.hbm_to_vmem [thread:$0]  %s195, 128, %s197, %s183
        $region20: #{loss_forward.3} parent=15 // pred_fallthru
          _
        // Predicated region
        $region21: #{loss_forward.3} parent=15 // pred_check
          %p200 = pneg %p98
        $region22: #{loss_forward.3} parent=15 // pred_check_branch
          %202 = sbr.rel (%p200) target = $region24
        $region23: #{loss_forward.3} parent=15 // pred_region
          %s203 = sand.u32 %s88, 1
          %s204 = scalar_lea.sflag [#allocation7], %s203
          %s205 = sand.u32 %s88, 1
          %s206 = smul.addr %s205, 8
          %s207 = scalar_lea.vmem [#allocation6], %s206
          %s208 = sadd.s32 %s33, %s34
          %210 = vsyncadd %s204, 0
          %s211 = sadd.s32 %s208, %s32
          %s212 = smul.addr %s211, 8
          %s213 = scalar_lea.hbm %s2, %s212
          %s215 = sshll.u32 %s213, 4
          %s216 = int_to_ptr.hbm [resolvable:$true] %s215
          %s217 = sshll.u32 %s207, 4
          %s218 = int_to_ptr.vmem [resolvable:$true] %s217
          %220 = dma.hbm_to_vmem [thread:$0]  %s216, 128, %s218, %s204
        $region24: #{loss_forward.3} parent=15 // pred_fallthru
          _
      $region16: #{loss_forward.3} parent=5 // pred_fallthru
        _
      %p221 = scmp.le.s32.totalorder 1, %s25
      %p222 = scmp.lt.s32.totalorder %s25, 3
      %p223 = pnand %p221, %p222
      %p224 = pneg %p223
      // Predicated region
      $region25: #{loss_forward.3} parent=5 // pred_check
        _
      $region26: #{loss_forward.3} parent=5 // pred_check_branch
        %226 = sbr.rel (%p223) target = $region28
      $region27: #{loss_forward.3} parent=5 // pred_region
        %s227 = ssub.s32 %s25, 1
        %s228 = sand.u32 %s61, 1
        %s229 = scalar_lea.sflag [#allocation5], %s228
        %s230 = sand.u32 %s61, 1
        %s231 = smul.addr %s230, 8
        %s232 = scalar_lea.vmem [#allocation4], %s231
        // Predicated region
        $region29: #{loss_forward.3} parent=27 // pred_check
          %p233 = pneg %p74
        $region30: #{loss_forward.3} parent=27 // pred_check_branch
          %235 = sbr.rel (%p233) target = $region32
        $region31: #{loss_forward.3} parent=27 // pred_region
          %237 = dma.done %s229, 128
        $region32: #{loss_forward.3} parent=27 // pred_fallthru
          _
        %s238 = sand.u32 %s91, 1
        %s239 = scalar_lea.sflag [#allocation7], %s238
        %s240 = sand.u32 %s91, 1
        %s241 = smul.addr %s240, 8
        %s242 = scalar_lea.vmem [#allocation6], %s241
        // Predicated region
        $region33: #{loss_forward.3} parent=27 // pred_check
          %p243 = pneg %p104
        $region34: #{loss_forward.3} parent=27 // pred_check_branch
          %245 = sbr.rel (%p243) target = $region36
        $region35: #{loss_forward.3} parent=27 // pred_region
          %247 = dma.done %s239, 128
        $region36: #{loss_forward.3} parent=27 // pred_fallthru
          _
        %s248 = sand.u32 %s61, 1
        %s249 = scalar_lea.sflag [#allocation5], %s248
        %s250 = sand.u32 %s61, 1
        %s251 = smul.addr %s250, 8
        %s252 = scalar_lea.vmem [#allocation4], %s251
        %p253 = pneg %p74
        %p254 = pneg %p71
        %s255 = sand.u32 %s91, 1
        %s256 = scalar_lea.sflag [#allocation7], %s255
        %s257 = sand.u32 %s91, 1
        %s258 = smul.addr %s257, 8
        %s259 = scalar_lea.vmem [#allocation6], %s258
        %p260 = pneg %p104
        %p261 = pneg %p101
        %p262 = pneg %p132
        %p263 = pneg %p129
        %p264 = scmp.lt.s32.totalorder %s35, 1
        %s265 = scalar_select %p264, %s35, 1
        %p266 = scmp.lt.s32.totalorder %s36, 0
        %s267 = scalar_select %p266, %s36, 0
        %s268 = sadd.s32 %s267, %s265
        %s269 = smul.addr %s268, 8
        %s270 = scalar_lea.vmem %s3, %s269
        %p271 = pneg %p160
        %p272 = pneg %p157
        %p273 = scmp.lt.s32.totalorder %s35, 1
        %s274 = scalar_select %p273, %s35, 1
        %p275 = scmp.lt.s32.totalorder %s36, 0
        %s276 = scalar_select %p275, %s36, 0
        %s277 = sadd.s32 %s276, %s274
        %s278 = smul.addr %s277, 8
        %s279 = scalar_lea.vmem %s4, %s278
        %s280 = sadd.s32 %s36, %s37
        %s281 = sadd.s32 %s36, %s37
        %p282 = scmp.lt.s32.totalorder %s35, 1
        %s283 = scalar_select %p282, %s35, 1
        %p284 = scmp.lt.s32.totalorder %s36, 0
        %s285 = scalar_select %p284, %s36, 0
        %s286 = sadd.s32 %s285, %s283
        %s287 = smul.addr %s286, 8
        %s288 = scalar_lea.vmem %s3, %s287
        %p289 = scmp.lt.s32.totalorder %s35, 1
        %s290 = scalar_select %p289, %s35, 1
        %p291 = scmp.lt.s32.totalorder %s36, 0
        %s292 = scalar_select %p291, %s36, 0
        %s293 = sadd.s32 %s292, %s290
        %s294 = smul.addr %s293, 8
        %s295 = scalar_lea.vmem %s4, %s294
        %p296 = scmp.eq.s32.totalorder %s37, 0
        // Predicated region
        $region37: #{loss_forward.3} parent=27 // pred_check
          %p297 = pneg %p296
        $region38: #{loss_forward.3} parent=27 // pred_check_branch
          %299 = sbr.rel (%p297) target = $region40
        $region39: #{loss_forward.3} parent=27 // pred_region
          %300 = vst [vmem:[%s288] sm:$0xff] 0.0
          %301 = vst [vmem:[%s295] sm:$0xff] 0.0
        $region40: #{loss_forward.3} parent=27 // pred_fallthru
          _
        %s302 = sld [smem:[#allocation3 + %s35]]
        %v303 = vld [vmem:[%s232] sm:$0xff]
        %v304 = vld [vmem:[%s242] sm:$0xff]
        %v305 = vstv %s302
        %vm306 = vcmp.gt.f32.partialorder %v304, %v305
        %v307 = vsub.f32 %v303, %v304
        %v308 = vsel %vm306, %v307, 0.0
        %v309 = vand.u32 2147483647, %v308
        %v310 = vmin.f32 %v309, 1.0
        %v311 = vmul.f32 %v310, 0.5
        %v312 = vsub.f32 %v309, %v311
        %v313 = vmul.f32 %v310, %v312
        %v314 = vsel %vm306, 1, 0
        %v315 = vcvt.s32.f32 %v314
        %v316 = vld [vmem:[%s288] sm:$0xff]
        %v317 = vadd.f32 %v313, 0.0
        %v318 = vadd.f32 %v316, %v317
        %319 = vst [vmem:[%s288] sm:$0xff] %v318
        %v320 = vld [vmem:[%s295] sm:$0xff]
        %v321 = vadd.f32 %v315, 0.0
        %v322 = vadd.f32 %v320, %v321
        %323 = vst [vmem:[%s295] sm:$0xff] %v322
        %p324 = scmp.lt.s32.totalorder %s35, 1
        %s325 = scalar_select %p324, %s35, 1
        %p326 = scmp.lt.s32.totalorder %s36, 0
        %s327 = scalar_select %p326, %s36, 0
        %s328 = sadd.s32 %s327, %s325
        %s329 = smul.addr %s328, 8
        %s330 = scalar_lea.vmem %s3, %s329
        %p331 = scmp.lt.s32.totalorder %s35, 1
        %s332 = scalar_select %p331, %s35, 1
        %p333 = scmp.lt.s32.totalorder %s36, 0
        %s334 = scalar_select %p333, %s36, 0
        %s335 = sadd.s32 %s334, %s332
        %s336 = smul.addr %s335, 8
        %s337 = scalar_lea.vmem %s4, %s336
        // Predicated region
        $region41: #{loss_forward.3} parent=27 // pred_check
          %p338 = pneg %p129
        $region42: #{loss_forward.3} parent=27 // pred_check_branch
          %340 = sbr.rel (%p338) target = $region44
        $region43: #{loss_forward.3} parent=27 // pred_region
          _
        $region44: #{loss_forward.3} parent=27 // pred_fallthru
          _
        // Predicated region
        $region45: #{loss_forward.3} parent=27 // pred_check
          %p341 = pneg %p157
        $region46: #{loss_forward.3} parent=27 // pred_check_branch
          %343 = sbr.rel (%p341) target = $region48
        $region47: #{loss_forward.3} parent=27 // pred_region
          _
        $region48: #{loss_forward.3} parent=27 // pred_fallthru
          _
      $region28: #{loss_forward.3} parent=5 // pred_fallthru
        _
      %p344 = scmp.le.s32.totalorder 2, %s25
      // Predicated region
      $region49: #{loss_forward.3} parent=5 // pred_check
        %p345 = pneg %p344
      $region50: #{loss_forward.3} parent=5 // pred_check_branch
        %347 = sbr.rel (%p345) target = $region52
      $region51: #{loss_forward.3} parent=5 // pred_region
        %s348 = ssub.s32 %s25, 2
        // Predicated region
        $region53: #{loss_forward.3} parent=51 // pred_check
          %p349 = pneg %p135
        $region54: #{loss_forward.3} parent=51 // pred_check_branch
          %351 = sbr.rel (%p349) target = $region56
        $region55: #{loss_forward.3} parent=51 // pred_region
          %p352 = scmp.lt.s32.totalorder %s38, 1
          %s353 = scalar_select %p352, %s38, 1
          %p354 = scmp.lt.s32.totalorder %s39, 0
          %s355 = scalar_select %p354, %s39, 0
          %s356 = sadd.s32 %s355, %s353
          %s357 = smul.addr %s356, 8
          %s358 = scalar_lea.vmem %s3, %s357
        $region56: #{loss_forward.3} parent=51 // pred_fallthru
          _
        // Predicated region
        $region57: #{loss_forward.3} parent=51 // pred_check
          %p359 = pneg %p163
        $region58: #{loss_forward.3} parent=51 // pred_check_branch
          %361 = sbr.rel (%p359) target = $region60
        $region59: #{loss_forward.3} parent=51 // pred_region
          %p362 = scmp.lt.s32.totalorder %s38, 1
          %s363 = scalar_select %p362, %s38, 1
          %p364 = scmp.lt.s32.totalorder %s39, 0
          %s365 = scalar_select %p364, %s39, 0
          %s366 = sadd.s32 %s365, %s363
          %s367 = smul.addr %s366, 8
          %s368 = scalar_lea.vmem %s4, %s367
        $region60: #{loss_forward.3} parent=51 // pred_fallthru
          _
      $region52: #{loss_forward.3} parent=5 // pred_fallthru
        _
    $region6: #{loss_forward.3} parent=1 // loop_footer
      %s29 = sadd.s32 1, %s25
    $region7: #{loss_forward.3} parent=1 // loop_footer_branch
      %24 = sbr.rel target = $region3
    $region8: #{loss_forward.3} parent=1 // loop_exit
      _
    %369 = vsyncpa [#allocation5], 1
    %s370 = scalar_lea.sflag [#allocation5], 1
    %371 = vsyncpa %s370, 1
    %372 = vsyncpa [#allocation7], 1
    %s373 = scalar_lea.sflag [#allocation7], 1
    %374 = vsyncpa %s373, 1

</llo_original>
